<compile_context>
chip_gen: v5e
topology: v5e:2x2
jax: 0.10.0
libtpu: 0.0.40
codegen_flags: <defaults>
</compile_context>

<pallas_src>
import functools

import jax
import jax.numpy as jnp
from jax.experimental import pallas as pl
from jax.experimental.pallas import tpu as pltpu

_LANE = 128
_SUBLANE_ALIGN = 32          # covers f32 (8), bf16 (16), int8/fp8 (32) packing
_MIN_SPLIT_ROWS = 512        # rows per core before engaging the 2-way TC split


def _round_up(x, m):
    return -(-x // m) * m


def _cdiv(a, b):
    return -(-a // b)


def _loss_partials_kernel(pp_ref, pa_ref, tp_ref, ta_ref, out_ref):
    """Accumulate lane-wise partial sums of (bce, weighted-mse, target-prob).

    The (1, 3, 128) output block stays resident across the trailing
    ("arbitrary") reduction axis, so we accumulate straight into it.
    """
    i = pl.program_id(1)

    @pl.when(i == 0)
    def _init():
        out_ref[...] = jnp.zeros_like(out_ref)

    pp = pp_ref[...].astype(jnp.float32)   # pred prob
    pa = pa_ref[...].astype(jnp.float32)   # pred angle
    tp = tp_ref[...].astype(jnp.float32)   # target prob
    ta = ta_ref[...].astype(jnp.float32)   # target angle

    # BCE with PyTorch's log clamp at -100, refactored as
    #   -(tp*log_p + (1-tp)*log_1mp) == -(log_1mp + tp*(log_p - log_1mp))
    log_p = jnp.maximum(jnp.log(pp), -100.0)
    log_1mp = jnp.maximum(jnp.log(1.0 - pp), -100.0)
    bce_elem = -(log_1mp + tp * (log_p - log_1mp))

    diff = pa - ta
    wmse_elem = diff * diff * tp

    # No padding mask: zero-padded tail elements contribute exactly 0 to every
    # sum (pp=0 -> log_1mp=0 and tp=0 -> bce=0; diff=0, tp=0 -> wmse=0; tp=0).

    out_ref[0, 0:1, :] += jnp.sum(bce_elem, axis=0, keepdims=True)
    out_ref[0, 1:2, :] += jnp.sum(wmse_elem, axis=0, keepdims=True)
    out_ref[0, 2:3, :] += jnp.sum(tp, axis=0, keepdims=True)


@functools.partial(jax.jit,
                   static_argnames=("bce_weight", "mse_weight", "max_tile_rows"))
def loss_func_pallas(output, target, bce_weight=0.5, mse_weight=0.5,
                     max_tile_rows=None):
    """output: (B, 2, C); target: (B, C, 2). Returns scalar f32 loss."""
    B, K, C = output.shape
    assert K == 2
    assert target.shape == (B, C, 2)
    n = B * C

    itemsize = max(jnp.dtype(output.dtype).itemsize,
                   jnp.dtype(target.dtype).itemsize)

    # ---- per-generation tile budget (all static Python ints) ----
    if max_tile_rows is None:
        try:
            # 128 MiB VMEM (v5e/v6e) -> 32 MiB of pipeline buffers;
            # 64 MiB (v7x) or unknown -> conservative 16 MiB.
            big_vmem = pltpu.get_tpu_info().vmem_capacity_bytes >= (96 << 20)
        except Exception:
            big_vmem = False
        budget = (32 << 20) if big_vmem else (16 << 20)
        max_tile_rows = max(
            _SUBLANE_ALIGN,
            (budget // (4 * 2 * _LANE * itemsize))
            // _SUBLANE_ALIGN * _SUBLANE_ALIGN)

    # ---- lane-dense tiling plan ----
    rows = _cdiv(n, _LANE)
    rows_aligned = _round_up(rows, _SUBLANE_ALIGN)
    # Engage the 2-way core split early: v7x has 2 TensorCores; on single-TC
    # v5e/v6e the extra "parallel" grid step is a harmless sequential loop.
    split_threshold = 2 * min(_MIN_SPLIT_ROWS, max_tile_rows)
    num_splits = 2 if rows_aligned >= split_threshold else 1
    rows_per_split = _round_up(_cdiv(rows_aligned, num_splits), _SUBLANE_ALIGN)
    tile_rows = _round_up(min(max_tile_rows, rows_per_split), _SUBLANE_ALIGN)
    tiles_per_split = _cdiv(rows_per_split, tile_rows)
    padded_rows = num_splits * tiles_per_split * tile_rows
    padded_total = padded_rows * _LANE

    # De-interleave in plain JAX (no transpose: target[:, :, 0] is the prob
    # plane).  With allow_input_fusion below, XLA may fuse this slice/pad/
    # reshape directly into the pallas_call operands (no HBM materialization).
    def _prep(flat):
        pad = padded_total - flat.shape[0]
        if pad:
            flat = jnp.pad(flat, (0, pad))   # zero pad: contributes 0 in-kernel
        return flat.reshape(padded_rows, _LANE)

    pp = _prep(output[:, 0, :].reshape(-1))
    pa = _prep(output[:, 1, :].reshape(-1))
    tp = _prep(target[:, :, 0].reshape(-1))
    ta = _prep(target[:, :, 1].reshape(-1))

    in_spec = pl.BlockSpec((tile_rows, _LANE),
                           lambda c, i: (c * tiles_per_split + i, 0))

    # VMEM budget: 4 planes x 2 pipeline buffers in the input dtype, doubled
    # for the in-kernel f32 upcast / elementwise temporaries, plus headroom.
    buf_bytes = 4 * 2 * tile_rows * _LANE * itemsize
    vmem_limit = min(max(2 * buf_bytes + (8 << 20), 32 << 20), 100 << 20)

    partials = pl.pallas_call(
        _loss_partials_kernel,
        out_shape=jax.ShapeDtypeStruct((num_splits, 3, _LANE), jnp.float32),
        grid=(num_splits, tiles_per_split),
        in_specs=[in_spec, in_spec, in_spec, in_spec],
        out_specs=pl.BlockSpec((1, 3, _LANE), lambda c, i: (c, 0, 0)),
        compiler_params=pltpu.CompilerParams(
            # TODO(synk): on v7x, verify with a profile that "parallel" shards
            # the leading axis across both TensorCores; if not, switch it to
            # pltpu.CORE_PARALLEL (or an explicit core_map split).
            dimension_semantics=("parallel", "arbitrary"),
            vmem_limit_bytes=vmem_limit,
            allow_input_fusion=[True, True, True, True],
        ),
    )(pp, pa, tp, ta)

    # Tiny scalar epilogue: combine per-core / per-lane partials.
    sums = jnp.sum(partials, axis=(0, 2))            # (3,)
    bce = sums[0] / n
    masked_mse = sums[1] / (sums[2] + 3e-15)
    return bce_weight * bce + mse_weight * masked_mse


def _reference_loss(output, target, bce_weight=0.5, mse_weight=0.5):
    """Pure-JAX reference mirroring the PyTorch forward."""
    pred_prob = output[:, 0, :]
    pred_angle = output[:, 1, :]
    tt = jnp.transpose(target, (0, 2, 1))
    target_prob, target_angle = tt[:, 0, :], tt[:, 1, :]
    log_p = jnp.maximum(jnp.log(pred_prob), -100.0)
    log_1mp = jnp.maximum(jnp.log(1.0 - pred_prob), -100.0)
    bce = jnp.mean(-(target_prob * log_p + (1.0 - target_prob) * log_1mp))
    mse = (pred_angle - target_angle) ** 2
    masked_mse = jnp.sum(mse * target_prob) / (jnp.sum(target_prob) + 3e-15)
    return bce_weight * bce + mse_weight * masked_mse


if __name__ == "__main__":
    root = jax.random.PRNGKey(0)

    def make_inputs(key, B, C):
        k1, k2, k3, k4 = jax.random.split(key, 4)
        pred_prob = jax.nn.sigmoid(jax.random.normal(k1, (B, C), dtype=jnp.float32))
        pred_angle = jax.random.normal(k2, (B, C), dtype=jnp.float32)
        output = jnp.stack([pred_prob, pred_angle], axis=1)              # (B, 2, C)
        target_prob = jax.random.bernoulli(k3, 0.5, (B, C)).astype(jnp.float32)
        target_angle = jax.random.uniform(k4, (B, C), dtype=jnp.float32)
        target = jnp.stack([target_prob, target_angle], axis=2)          # (B, C, 2)
        return output, target

    key1, key2 = jax.random.split(root)

    # Small shape: exercises zero-padding correctness (no mask) in one tile.
    out1, tgt1 = make_inputs(key1, 2, 16)
    loss1 = jax.block_until_ready(loss_func_pallas(out1, tgt1))
    ref1 = jax.block_until_ready(_reference_loss(out1, tgt1))
    assert jnp.allclose(loss1, ref1, rtol=1e-4, atol=1e-6), (loss1, ref1)

    # Modest shape with a small forced tile so the multi-tile accumulation and
    # the 2-way "parallel" core split are exercised (grid = (2, 2)).
    out2, tgt2 = make_inputs(key2, 8, 2048)
    loss2 = jax.block_until_ready(loss_func_pallas(out2, tgt2, max_tile_rows=32))
    ref2 = jax.block_until_ready(_reference_loss(out2, tgt2))
    assert jnp.allclose(loss2, ref2, rtol=1e-4, atol=1e-6), (loss2, ref2)

    print("KERNEL_OK")
</pallas_src>

<mosaic_0001>
module attributes {stable_mosaic.version = 11 : i64} {
  func.func @_loss_partials_kernel(%arg0: i32, %arg1: i32, %arg2: memref<32x128xf32, #tpu.memory_space<vmem>>, %arg3: memref<32x128xf32, #tpu.memory_space<vmem>>, %arg4: memref<32x128xf32, #tpu.memory_space<vmem>>, %arg5: memref<32x128xf32, #tpu.memory_space<vmem>>, %arg6: memref<1x3x128xf32, #tpu.memory_space<vmem>>) attributes {dimension_semantics = [#tpu.dimension_semantics<parallel>, #tpu.dimension_semantics<arbitrary>], iteration_bounds = array<i64: 1, 1>, scalar_prefetch = 0 : i64, scratch_operands = 0 : i64, tpu.core_type = #tpu.core_type<tc>, window_params = [{transform_indices = @transform_0, window_bounds = array<i64: 32, 128>}, {transform_indices = @transform_1, window_bounds = array<i64: 32, 128>}, {transform_indices = @transform_2, window_bounds = array<i64: 32, 128>}, {transform_indices = @transform_3, window_bounds = array<i64: 32, 128>}, {transform_indices = @transform_4, window_bounds = array<i64: 1, 3, 128>}]} {
    %c0_i32 = arith.constant 0 : i32
    %0 = arith.cmpi eq, %arg1, %c0_i32 : i32
    %1 = arith.extui %0 : i1 to i32
    %c0_i32_0 = arith.constant 0 : i32
    %2 = arith.cmpi ne, %1, %c0_i32_0 : i32
    scf.if %2 {
      %cst_30 = arith.constant 0.000000e+00 : f32
      %47 = vector.broadcast %cst_30 : f32 to vector<1x3x128xf32>
      %c0_31 = arith.constant 0 : index
      %c0_32 = arith.constant 0 : index
      %c0_33 = arith.constant 0 : index
      %48 = vector.load %arg6[%c0_31, %c0_32, %c0_33] : memref<1x3x128xf32, #tpu.memory_space<vmem>>, vector<1x3x128xf32>
      tpu.vector_store %arg6[%c0_31, %c0_32, %c0_33], %47 {strides = array<i32>} : memref<1x3x128xf32, #tpu.memory_space<vmem>>, vector<1x3x128xf32>,
    } else {
    }
    %c0 = arith.constant 0 : index
    %c0_1 = arith.constant 0 : index
    %3 = vector.load %arg2[%c0, %c0_1] : memref<32x128xf32, #tpu.memory_space<vmem>>, vector<32x128xf32>
    %c0_2 = arith.constant 0 : index
    %c0_3 = arith.constant 0 : index
    %4 = vector.load %arg3[%c0_2, %c0_3] : memref<32x128xf32, #tpu.memory_space<vmem>>, vector<32x128xf32>
    %c0_4 = arith.constant 0 : index
    %c0_5 = arith.constant 0 : index
    %5 = vector.load %arg4[%c0_4, %c0_5] : memref<32x128xf32, #tpu.memory_space<vmem>>, vector<32x128xf32>
    %c0_6 = arith.constant 0 : index
    %c0_7 = arith.constant 0 : index
    %6 = vector.load %arg5[%c0_6, %c0_7] : memref<32x128xf32, #tpu.memory_space<vmem>>, vector<32x128xf32>
    %7 = math.log %3 : vector<32x128xf32>
    %cst = arith.constant -1.000000e+02 : f32
    %8 = vector.broadcast %cst : f32 to vector<32x128xf32>
    %9 = arith.maximumf %7, %8 : vector<32x128xf32>
    %cst_8 = arith.constant 1.000000e+00 : f32
    %10 = vector.broadcast %cst_8 : f32 to vector<32x128xf32>
    %11 = arith.subf %10, %3 : vector<32x128xf32>
    %12 = math.log %11 : vector<32x128xf32>
    %cst_9 = arith.constant -1.000000e+02 : f32
    %13 = vector.broadcast %cst_9 : f32 to vector<32x128xf32>
    %14 = arith.maximumf %12, %13 : vector<32x128xf32>
    %15 = arith.subf %9, %14 : vector<32x128xf32>
    %16 = arith.mulf %5, %15 : vector<32x128xf32>
    %17 = arith.addf %14, %16 : vector<32x128xf32>
    %cst_10 = arith.constant 0.000000e+00 : f32
    %18 = vector.broadcast %cst_10 : f32 to vector<32x128xf32>
    %19 = arith.subf %18, %17 : vector<32x128xf32>
    %20 = arith.subf %4, %6 : vector<32x128xf32>
    %21 = arith.mulf %20, %20 : vector<32x128xf32>
    %22 = arith.mulf %21, %5 : vector<32x128xf32>
    %c0_11 = arith.constant 0 : index
    %c0_12 = arith.constant 0 : index
    %c0_13 = arith.constant 0 : index
    %23 = vector.load %arg6[%c0_11, %c0_12, %c0_13] : memref<1x3x128xf32, #tpu.memory_space<vmem>>, vector<1x1x128xf32>
    %24 = vector.shape_cast %23 : vector<1x1x128xf32> to vector<1x128xf32>
    %cst_14 = arith.constant dense<0.000000e+00> : vector<128xf32>
    %25 = vector.multi_reduction <add>, %19, %cst_14 [0] : vector<32x128xf32> to vector<128xf32>
    %26 = vector.shape_cast %25 : vector<128xf32> to vector<1x128xf32>
    %27 = arith.addf %24, %26 : vector<1x128xf32>
    %c0_15 = arith.constant 0 : index
    %c0_16 = arith.constant 0 : index
    %c0_17 = arith.constant 0 : index
    %28 = vector.load %arg6[%c0_15, %c0_16, %c0_17] : memref<1x3x128xf32, #tpu.memory_space<vmem>>, vector<1x1x128xf32>
    %29 = vector.shape_cast %28 : vector<1x1x128xf32> to vector<1x128xf32>
    %30 = vector.shape_cast %27 : vector<1x128xf32> to vector<1x1x128xf32>
    tpu.vector_store %arg6[%c0_15, %c0_16, %c0_17], %30 {strides = array<i32>} : memref<1x3x128xf32, #tpu.memory_space<vmem>>, vector<1x1x128xf32>,
    %c0_18 = arith.constant 0 : index
    %c1 = arith.constant 1 : index
    %c0_19 = arith.constant 0 : index
    %31 = vector.load %arg6[%c0_18, %c1, %c0_19] : memref<1x3x128xf32, #tpu.memory_space<vmem>>, vector<1x1x128xf32>
    %32 = vector.shape_cast %31 : vector<1x1x128xf32> to vector<1x128xf32>
    %cst_20 = arith.constant dense<0.000000e+00> : vector<128xf32>
    %33 = vector.multi_reduction <add>, %22, %cst_20 [0] : vector<32x128xf32> to vector<128xf32>
    %34 = vector.shape_cast %33 : vector<128xf32> to vector<1x128xf32>
    %35 = arith.addf %32, %34 : vector<1x128xf32>
    %c0_21 = arith.constant 0 : index
    %c1_22 = arith.constant 1 : index
    %c0_23 = arith.constant 0 : index
    %36 = vector.load %arg6[%c0_21, %c1_22, %c0_23] : memref<1x3x128xf32, #tpu.memory_space<vmem>>, vector<1x1x128xf32>
    %37 = vector.shape_cast %36 : vector<1x1x128xf32> to vector<1x128xf32>
    %38 = vector.shape_cast %35 : vector<1x128xf32> to vector<1x1x128xf32>
    tpu.vector_store %arg6[%c0_21, %c1_22, %c0_23], %38 {strides = array<i32>} : memref<1x3x128xf32, #tpu.memory_space<vmem>>, vector<1x1x128xf32>,
    %c0_24 = arith.constant 0 : index
    %c2 = arith.constant 2 : index
    %c0_25 = arith.constant 0 : index
    %39 = vector.load %arg6[%c0_24, %c2, %c0_25] : memref<1x3x128xf32, #tpu.memory_space<vmem>>, vector<1x1x128xf32>
    %40 = vector.shape_cast %39 : vector<1x1x128xf32> to vector<1x128xf32>
    %cst_26 = arith.constant dense<0.000000e+00> : vector<128xf32>
    %41 = vector.multi_reduction <add>, %5, %cst_26 [0] : vector<32x128xf32> to vector<128xf32>
    %42 = vector.shape_cast %41 : vector<128xf32> to vector<1x128xf32>
    %43 = arith.addf %40, %42 : vector<1x128xf32>
    %c0_27 = arith.constant 0 : index
    %c2_28 = arith.constant 2 : index
    %c0_29 = arith.constant 0 : index
    %44 = vector.load %arg6[%c0_27, %c2_28, %c0_29] : memref<1x3x128xf32, #tpu.memory_space<vmem>>, vector<1x1x128xf32>
    %45 = vector.shape_cast %44 : vector<1x1x128xf32> to vector<1x128xf32>
    %46 = vector.shape_cast %43 : vector<1x128xf32> to vector<1x1x128xf32>
    tpu.vector_store %arg6[%c0_27, %c2_28, %c0_29], %46 {strides = array<i32>} : memref<1x3x128xf32, #tpu.memory_space<vmem>>, vector<1x1x128xf32>,
    return
  }
  func.func @transform_0(%arg0: i32, %arg1: i32) -> (i32, i32) {
    %c1_i32 = arith.constant 1 : i32
    %0 = arith.muli %arg0, %c1_i32 : i32
    %1 = arith.addi %0, %arg1 : i32
    %c0_i32 = arith.constant 0 : i32
    %c0_i32_0 = arith.constant 0 : i32
    return %1, %c0_i32 : i32, i32
  }
  func.func @transform_1(%arg0: i32, %arg1: i32) -> (i32, i32) {
    %c1_i32 = arith.constant 1 : i32
    %0 = arith.muli %arg0, %c1_i32 : i32
    %1 = arith.addi %0, %arg1 : i32
    %c0_i32 = arith.constant 0 : i32
    %c0_i32_0 = arith.constant 0 : i32
    return %1, %c0_i32 : i32, i32
  }
  func.func @transform_2(%arg0: i32, %arg1: i32) -> (i32, i32) {
    %c1_i32 = arith.constant 1 : i32
    %0 = arith.muli %arg0, %c1_i32 : i32
    %1 = arith.addi %0, %arg1 : i32
    %c0_i32 = arith.constant 0 : i32
    %c0_i32_0 = arith.constant 0 : i32
    return %1, %c0_i32 : i32, i32
  }
  func.func @transform_3(%arg0: i32, %arg1: i32) -> (i32, i32) {
    %c1_i32 = arith.constant 1 : i32
    %0 = arith.muli %arg0, %c1_i32 : i32
    %1 = arith.addi %0, %arg1 : i32
    %c0_i32 = arith.constant 0 : i32
    %c0_i32_0 = arith.constant 0 : i32
    return %1, %c0_i32 : i32, i32
  }
  func.func @transform_4(%arg0: i32, %arg1: i32) -> (i32, i32, i32) {
    %c0_i32 = arith.constant 0 : i32
    %c0_i32_0 = arith.constant 0 : i32
    %c0_i32_1 = arith.constant 0 : i32
    return %arg0, %c0_i32, %c0_i32_0 : i32, i32, i32
  }
}

</mosaic_0001>

<llo_original>
// kernel: squeeze.7
$region0: #{squeeze.7}
  %s0 = inlined_call_operand.vmem [shape: f32[2,16], index: 0, kind: input, shape index: {}]
  %s1 = inlined_call_operand.vmem [shape: f32[32], index: 1, kind: output, shape index: {}]
  $region1: #{squeeze.7} parent=0
    #allocation0 [shape = 'u8[4096]{0}', space=vmem, size = 0x1000, scoped, tag = 'scoped mem for output reshape']
    #allocation1 [shape = 'u8[4096]{0}', space=vmem, size = 0x1000, scoped, tag = 'scoped mem for input reshape']
    %s3 = ssub.s32 4, 1
    %v4 = vld [vmem:[%s0] sm:%s3]
    %5 = vst [vmem:[#allocation1] sm:%s3] %v4
    %v6 = vld [vmem:[#allocation1] sm:$0x1]
    %vm7 = vcmask 130048
    %8 = vst.msk [vmem:[#allocation0] sm:$0x1] %vm7, %v6
    %s9 = scalar_lea.vmem [#allocation1], 1
    %v10 = vld [vmem:[%s9] sm:$0x1]
    %11 = vrot.lane.b32.xlu0 %v10, 16
    %v12 = vpop.permute.xlu0 %11
    %vm13 = vcmask 261248
    %14 = vst.msk [vmem:[#allocation0] sm:$0x1] %vm13, %v12
    %s16 = ssub.s32 2, 1
    %v17 = vld [vmem:[#allocation0] sm:%s16]
    %s19 = ssub.s32 2, 1
    %20 = vst [vmem:[%s1] sm:%s19] %v17

// kernel: loss_func_pallas.2
$region0: #{loss_func_pallas.2}
  #allocation0 [shape = 'u32[]', space=smem, size = 0x4, offset = 0x4, fixed_abs, tag = 'smem constant byte address 0x4 - core index']
  #allocation1 [shape = 'u32[72,128]{1,0:T(1,128)}', space=vmem, size = 0x9000, scoped, tag = 'internal scratch']
  #allocation2 [shape = 'u32[2048]{0}', space=vmem, size = 0x2000, scoped, tag = 'scoped memory for loss_func_pallas.2']
  #allocation3 [shape = 'u32[2048]{0}', space=vmem, size = 0x2000, scoped, tag = 'scoped memory for loss_func_pallas.2']
  #allocation4 [shape = 'u32[2048]{0}', space=vmem, size = 0x2000, scoped, tag = 'scoped memory for loss_func_pallas.2']
  #allocation5 [shape = 'u32[2048]{0}', space=vmem, size = 0x2000, scoped, tag = 'scoped memory for loss_func_pallas.2']
  #allocation6 [shape = 'u32[2048]{0}', space=vmem, size = 0x2000, scoped, tag = 'scoped memory for loss_func_pallas.2']
  #allocation7 [shape = 'u32[2048]{0}', space=vmem, size = 0x2000, scoped, tag = 'scoped memory for loss_func_pallas.2']
  #allocation8 [shape = 'u32[2048]{0}', space=vmem, size = 0x2000, scoped, tag = 'scoped memory for loss_func_pallas.2']
  #allocation9 [shape = 'u32[2048]{0}', space=vmem, size = 0x2000, scoped, tag = 'scoped memory for loss_func_pallas.2']
  #allocation10 [shape = 'u32[2048]{0}', space=vmem, size = 0x2000, scoped, tag = 'scoped memory for loss_func_pallas.2']
  #allocation11 [shape = 'u32[2048]{0}', space=vmem, size = 0x2000, scoped, tag = 'scoped memory for loss_func_pallas.2']
  #allocation12 [shape = 'u32[2048]{0}', space=vmem, size = 0x2000, scoped, tag = 'scoped memory for loss_func_pallas.2']
  #allocation13 [shape = 'u32[2048]{0}', space=vmem, size = 0x2000, scoped, tag = 'scoped memory for loss_func_pallas.2']
  #allocation14 [shape = 'u32[2048]{0}', space=vmem, size = 0x2000, scoped, tag = 'scoped memory for loss_func_pallas.2']
  #allocation15 [shape = 'u32[2048]{0}', space=vmem, size = 0x2000, scoped, tag = 'scoped memory for loss_func_pallas.2']
  #allocation16 [shape = 'u32[2048]{0}', space=vmem, size = 0x2000, scoped, tag = 'scoped memory for loss_func_pallas.2']
  #allocation17 [shape = 'u32[2048]{0}', space=vmem, size = 0x2000, scoped, tag = 'scoped memory for loss_func_pallas.2']
  #allocation18 [shape = 'u32[2048]{0}', space=vmem, size = 0x2000, scoped, tag = 'scoped memory for loss_func_pallas.2']
  #allocation19 [shape = 'u32[2048]{0}', space=vmem, size = 0x2000, scoped, tag = 'scoped memory for loss_func_pallas.2']
  #allocation20 [shape = 'u32[2048]{0}', space=vmem, size = 0x2000, scoped, tag = 'scoped memory for loss_func_pallas.2']
  #allocation21 [shape = 'u32[2048]{0}', space=vmem, size = 0x2000, scoped, tag = 'scoped memory for loss_func_pallas.2']
  %s0 = inlined_call_operand.vmem [shape: f32[32], index: 0, kind: input, shape index: {}]
  %s1 = inlined_call_operand.<no memory space> [shape: f32[], index: 1, kind: input, shape index: {}]
  %s2 = inlined_call_operand.vmem [shape: f32[32], index: 2, kind: input, shape index: {}]
  %s3 = inlined_call_operand.vmem [shape: f32[32], index: 3, kind: input, shape index: {}]
  %s4 = inlined_call_operand.vmem [shape: f32[32], index: 4, kind: input, shape index: {}]
  %s5 = inlined_call_operand.vmem [shape: f32[1,3,128], index: 5, kind: output, shape index: {}]
  %s6 = sld [smem:[#allocation0]]
  $region30: #{loss_func_pallas.2} parent=0
    _
  %s8 = ssub.s32 1, %s6
  %s9 = scalar_select 0, %s8, %s6
  %v10 = vstv %s1
  %v11 = vstv %s1
  %v12 = vstv %s1
  %v13 = vstv %s1
  $region1: #{loss_func_pallas.2} parent=0
    #allocation22 [shape = 'u8[16384]{0}', space=vmem, size = 0x4000, dematerialized = true, scoped, tag = 'FusionAdapter Buffer %fusion.4 = f32[32,128]{1,0:T(8,128)} fusion(%param_4.3, %param_1.15), kind=kLoop, calls=%fused_computation.4.clone, metadata={op_name="jit(loss_func_pallas)/reshape" stack_frame_id=12}']
    #allocation23 [shape = 'u8[16384]{0}', space=vmem, size = 0x4000, dematerialized = true, scoped, tag = 'FusionAdapter Buffer %fusion.3 = f32[32,128]{1,0:T(8,128)} fusion(%param_3.8, %param_1.15), kind=kLoop, calls=%fused_computation.3.clone, metadata={op_name="jit(loss_func_pallas)/reshape" stack_frame_id=17}']
    #allocation24 [shape = 'u8[16384]{0}', space=vmem, size = 0x4000, dematerialized = true, scoped, tag = 'FusionAdapter Buffer %fusion.2 = f32[32,128]{1,0:T(8,128)} fusion(%param_2.7, %param_1.15), kind=kLoop, calls=%fused_computation.2.clone, metadata={op_name="jit(loss_func_pallas)/reshape" stack_frame_id=22}']
    #allocation25 [shape = 'u8[16384]{0}', space=vmem, size = 0x4000, dematerialized = true, scoped, tag = 'FusionAdapter Buffer %fusion.1 = f32[32,128]{1,0:T(8,128)} fusion(%param_0.18, %param_1.15), kind=kLoop, calls=%fused_computation.1.clone, metadata={op_name="jit(loss_func_pallas)/reshape" stack_frame_id=27}']
    // Predicated region
    $region2: #{loss_func_pallas.2} parent=1 // pred_check
      _
    $region3: #{loss_func_pallas.2} parent=1 // pred_check_branch
      %15 = sbr.rel (0) target = $region5
    $region4: #{loss_func_pallas.2} parent=1 // pred_region
      %s16 = sadd.s32 0, 0
      %s17 = smul.u32 4, %s16
      %s18 = ssub.s32 1, %s17
      %p19 = scmp.gt.s32.totalorder %s18, 0
      %s20 = scalar_select %p19, %s18, 0
      %p21 = scmp.lt.s32.totalorder %s17, 0
      %s22 = scalar_select %p21, %s17, 0
      %s23 = scalar_lea.vmem %s4, %s22
      %s24 = sadd.s32 0, 0
      %s25 = smul.u32 4, %s24
      %s26 = ssub.s32 1, %s25
      %p27 = scmp.gt.s32.totalorder %s26, 0
      %s28 = scalar_select %p27, %s26, 0
    $region5: #{loss_func_pallas.2} parent=1 // pred_fallthru
      _
    // Predicated region
    $region6: #{loss_func_pallas.2} parent=1 // pred_check
      _
    $region7: #{loss_func_pallas.2} parent=1 // pred_check_branch
      %30 = sbr.rel (0) target = $region9
    $region8: #{loss_func_pallas.2} parent=1 // pred_region
      %s31 = sadd.s32 0, 0
      %s32 = smul.u32 4, %s31
      %s33 = ssub.s32 1, %s32
      %p34 = scmp.gt.s32.totalorder %s33, 0
      %s35 = scalar_select %p34, %s33, 0
      %p36 = scmp.lt.s32.totalorder %s32, 0
      %s37 = scalar_select %p36, %s32, 0
      %s38 = scalar_lea.vmem %s3, %s37
      %s39 = sadd.s32 0, 0
      %s40 = smul.u32 4, %s39
      %s41 = ssub.s32 1, %s40
      %p42 = scmp.gt.s32.totalorder %s41, 0
      %s43 = scalar_select %p42, %s41, 0
    $region9: #{loss_func_pallas.2} parent=1 // pred_fallthru
      _
    // Predicated region
    $region10: #{loss_func_pallas.2} parent=1 // pred_check
      _
    $region11: #{loss_func_pallas.2} parent=1 // pred_check_branch
      %45 = sbr.rel (0) target = $region13
    $region12: #{loss_func_pallas.2} parent=1 // pred_region
      %s46 = sadd.s32 0, 0
      %s47 = smul.u32 4, %s46
      %s48 = ssub.s32 1, %s47
      %p49 = scmp.gt.s32.totalorder %s48, 0
      %s50 = scalar_select %p49, %s48, 0
      %p51 = scmp.lt.s32.totalorder %s47, 0
      %s52 = scalar_select %p51, %s47, 0
      %s53 = scalar_lea.vmem %s2, %s52
      %s54 = sadd.s32 0, 0
      %s55 = smul.u32 4, %s54
      %s56 = ssub.s32 1, %s55
      %p57 = scmp.gt.s32.totalorder %s56, 0
      %s58 = scalar_select %p57, %s56, 0
    $region13: #{loss_func_pallas.2} parent=1 // pred_fallthru
      _
    // Predicated region
    $region14: #{loss_func_pallas.2} parent=1 // pred_check
      _
    $region15: #{loss_func_pallas.2} parent=1 // pred_check_branch
      %60 = sbr.rel (0) target = $region17
    $region16: #{loss_func_pallas.2} parent=1 // pred_region
      %s61 = sadd.s32 0, 0
      %s62 = smul.u32 4, %s61
      %s63 = ssub.s32 1, %s62
      %p64 = scmp.gt.s32.totalorder %s63, 0
      %s65 = scalar_select %p64, %s63, 0
      %p66 = scmp.lt.s32.totalorder %s62, 0
      %s67 = scalar_select %p66, %s62, 0
      %s68 = scalar_lea.vmem %s0, %s67
      %s69 = sadd.s32 0, 0
      %s70 = smul.u32 4, %s69
      %s71 = ssub.s32 1, %s70
      %p72 = scmp.gt.s32.totalorder %s71, 0
      %s73 = scalar_select %p72, %s71, 0
    $region17: #{loss_func_pallas.2} parent=1 // pred_fallthru
      _
    %s74 = sadd.s32 0, 0
    %s75 = smul.u32 4, %s74
    %s76 = ssub.s32 1, %s75
    %p77 = scmp.gt.s32.totalorder %s76, 0
    %s78 = scalar_select %p77, %s76, 0
    %p79 = scmp.lt.s32.totalorder %s75, 0
    %s80 = scalar_select %p79, %s75, 0
    %s81 = scalar_lea.vmem %s4, %s80
    %s82 = sadd.s32 0, 0
    %s83 = smul.u32 4, %s82
    %s84 = ssub.s32 1, %s83
    %p85 = scmp.gt.s32.totalorder %s84, 0
    %s86 = scalar_select %p85, %s84, 0
    %p87 = scmp.lt.s32.totalorder %s83, 0
    %s88 = scalar_select %p87, %s83, 0
    %s89 = scalar_lea.vmem %s3, %s88
    %s90 = sadd.s32 0, 0
    %s91 = smul.u32 4, %s90
    %s92 = ssub.s32 1, %s91
    %p93 = scmp.gt.s32.totalorder %s92, 0
    %s94 = scalar_select %p93, %s92, 0
    %p95 = scmp.lt.s32.totalorder %s91, 0
    %s96 = scalar_select %p95, %s91, 0
    %s97 = scalar_lea.vmem %s2, %s96
    %s98 = sadd.s32 0, 0
    %s99 = smul.u32 4, %s98
    %s100 = ssub.s32 1, %s99
    %p101 = scmp.gt.s32.totalorder %s100, 0
    %s102 = scalar_select %p101, %s100, 0
    %p103 = scmp.lt.s32.totalorder %s99, 0
    %s104 = scalar_select %p103, %s99, 0
    %s105 = scalar_lea.vmem %s0, %s104
    %s106 = sadd.s32 0, 0
    %s107 = smul.u32 4, %s106
    %s108 = ssub.s32 1, %s107
    %p109 = scmp.gt.s32.totalorder %s108, 0
    %s110 = scalar_select %p109, %s108, 0
    %p111 = scmp.lt.s32.totalorder %s107, 0
    %s112 = scalar_select %p111, %s107, 0
    %s113 = scalar_lea.vmem %s4, %s112
    %s114 = sadd.s32 0, 0
    %s115 = smul.u32 4, %s114
    %s116 = ssub.s32 1, %s115
    %p117 = scmp.gt.s32.totalorder %s116, 0
    %s118 = scalar_select %p117, %s116, 0
    %s119 = sadd.s32 0, 0
    %s120 = smul.u32 4, %s119
    %s121 = ssub.s32 1, %s120
    %p122 = scmp.gt.s32.totalorder %s121, 0
    %s123 = scalar_select %p122, %s121, 0
    %p124 = scmp.lt.s32.totalorder %s120, 0
    %s125 = scalar_select %p124, %s120, 0
    %s126 = scalar_lea.vmem %s3, %s125
    %s127 = sadd.s32 0, 0
    %s128 = smul.u32 4, %s127
    %s129 = ssub.s32 1, %s128
    %p130 = scmp.gt.s32.totalorder %s129, 0
    %s131 = scalar_select %p130, %s129, 0
    %s132 = sadd.s32 0, 0
    %s133 = smul.u32 4, %s132
    %s134 = ssub.s32 1, %s133
    %p135 = scmp.gt.s32.totalorder %s134, 0
    %s136 = scalar_select %p135, %s134, 0
    %p137 = scmp.lt.s32.totalorder %s133, 0
    %s138 = scalar_select %p137, %s133, 0
    %s139 = scalar_lea.vmem %s2, %s138
    %s140 = sadd.s32 0, 0
    %s141 = smul.u32 4, %s140
    %s142 = ssub.s32 1, %s141
    %p143 = scmp.gt.s32.totalorder %s142, 0
    %s144 = scalar_select %p143, %s142, 0
    %s145 = sadd.s32 0, 0
    %s146 = smul.u32 4, %s145
    %s147 = ssub.s32 1, %s146
    %p148 = scmp.gt.s32.totalorder %s147, 0
    %s149 = scalar_select %p148, %s147, 0
    %p150 = scmp.lt.s32.totalorder %s146, 0
    %s151 = scalar_select %p150, %s146, 0
    %s152 = scalar_lea.vmem %s0, %s151
    %s153 = sadd.s32 0, 0
    %s154 = smul.u32 4, %s153
    %s155 = ssub.s32 1, %s154
    %p156 = scmp.gt.s32.totalorder %s155, 0
    %s157 = scalar_select %p156, %s155, 0
    %s158 = ssub.s32 0, %s115
    %p159 = scmp.lt.s32.totalorder %s158, 0
    %s160 = scalar_select %p159, 0, 255
    %s161 = sand.u32 1, %s160
    %s162 = sand.u32 1, %s161
    %v163 = vld [vmem:[%s113] sm:%s162]
    %s164 = ssub.s32 0, %s115
    %v165 = vstv %s164
    %vm166 = vcmp.lt.s32.totalorder %v165, 0
    %v167 = vsel %vm166, %v10, %v163
    %s168 = smul.addr %s115, 1024
    %v169 = vlaneseq
    %v170 = vstv %s168
    %v171 = vadd.s32 %v169, %v170
    %vm172 = vcmp.lt.s32.totalorder %v171, 32
    %v173 = vsel %vm172, %v167, %v10
    %s175 = ssub.s32 256, 1
    %176 = vst [vmem:[#allocation22] sm:%s175] %v173
    %s177 = scalar_lea.vmem [#allocation22], 8
    %s179 = ssub.s32 256, 1
    %180 = vst [vmem:[%s177] sm:%s179] %v10
    %s181 = scalar_lea.vmem [#allocation22], 16
    %s183 = ssub.s32 256, 1
    %184 = vst [vmem:[%s181] sm:%s183] %v10
    %s185 = scalar_lea.vmem [#allocation22], 24
    %s187 = ssub.s32 256, 1
    %188 = vst [vmem:[%s185] sm:%s187] %v10
    %s189 = ssub.s32 0, %s128
    %p190 = scmp.lt.s32.totalorder %s189, 0
    %s191 = scalar_select %p190, 0, 255
    %s192 = sand.u32 1, %s191
    %s193 = sand.u32 1, %s192
    %v194 = vld [vmem:[%s126] sm:%s193]
    %s195 = ssub.s32 0, %s128
    %v196 = vstv %s195
    %vm197 = vcmp.lt.s32.totalorder %v196, 0
    %v198 = vsel %vm197, %v11, %v194
    %s199 = smul.addr %s128, 1024
    %v200 = vlaneseq
    %v201 = vstv %s199
    %v202 = vadd.s32 %v200, %v201
    %vm203 = vcmp.lt.s32.totalorder %v202, 32
    %v204 = vsel %vm203, %v198, %v11
    %s206 = ssub.s32 256, 1
    %207 = vst [vmem:[#allocation23] sm:%s206] %v204
    %s208 = scalar_lea.vmem [#allocation23], 8
    %s210 = ssub.s32 256, 1
    %211 = vst [vmem:[%s208] sm:%s210] %v11
    %s212 = scalar_lea.vmem [#allocation23], 16
    %s214 = ssub.s32 256, 1
    %215 = vst [vmem:[%s212] sm:%s214] %v11
    %s216 = scalar_lea.vmem [#allocation23], 24
    %s218 = ssub.s32 256, 1
    %219 = vst [vmem:[%s216] sm:%s218] %v11
    %s220 = ssub.s32 0, %s141
    %p221 = scmp.lt.s32.totalorder %s220, 0
    %s222 = scalar_select %p221, 0, 255
    %s223 = sand.u32 1, %s222
    %s224 = sand.u32 1, %s223
    %v225 = vld [vmem:[%s139] sm:%s224]
    %s226 = ssub.s32 0, %s141
    %v227 = vstv %s226
    %vm228 = vcmp.lt.s32.totalorder %v227, 0
    %v229 = vsel %vm228, %v12, %v225
    %s230 = smul.addr %s141, 1024
    %v231 = vlaneseq
    %v232 = vstv %s230
    %v233 = vadd.s32 %v231, %v232
    %vm234 = vcmp.lt.s32.totalorder %v233, 32
    %v235 = vsel %vm234, %v229, %v12
    %s237 = ssub.s32 256, 1
    %238 = vst [vmem:[#allocation24] sm:%s237] %v235
    %s239 = scalar_lea.vmem [#allocation24], 8
    %s241 = ssub.s32 256, 1
    %242 = vst [vmem:[%s239] sm:%s241] %v12
    %s243 = scalar_lea.vmem [#allocation24], 16
    %s245 = ssub.s32 256, 1
    %246 = vst [vmem:[%s243] sm:%s245] %v12
    %s247 = scalar_lea.vmem [#allocation24], 24
    %s249 = ssub.s32 256, 1
    %250 = vst [vmem:[%s247] sm:%s249] %v12
    %s251 = ssub.s32 0, %s154
    %p252 = scmp.lt.s32.totalorder %s251, 0
    %s253 = scalar_select %p252, 0, 255
    %s254 = sand.u32 1, %s253
    %s255 = sand.u32 1, %s254
    %v256 = vld [vmem:[%s152] sm:%s255]
    %s257 = ssub.s32 0, %s154
    %v258 = vstv %s257
    %vm259 = vcmp.lt.s32.totalorder %v258, 0
    %v260 = vsel %vm259, %v13, %v256
    %s261 = smul.addr %s154, 1024
    %v262 = vlaneseq
    %v263 = vstv %s261
    %v264 = vadd.s32 %v262, %v263
    %vm265 = vcmp.lt.s32.totalorder %v264, 32
    %v266 = vsel %vm265, %v260, %v13
    %s268 = ssub.s32 256, 1
    %269 = vst [vmem:[#allocation25] sm:%s268] %v266
    %s270 = scalar_lea.vmem [#allocation25], 8
    %s272 = ssub.s32 256, 1
    %273 = vst [vmem:[%s270] sm:%s272] %v13
    %s274 = scalar_lea.vmem [#allocation25], 16
    %s276 = ssub.s32 256, 1
    %277 = vst [vmem:[%s274] sm:%s276] %v13
    %s278 = scalar_lea.vmem [#allocation25], 24
    %s280 = ssub.s32 256, 1
    %281 = vst [vmem:[%s278] sm:%s280] %v13
    %p282 = scmp.eq.s32.totalorder 0, 0
    // Predicated region
    $region18: #{loss_func_pallas.2} parent=1 // pred_check
      %p283 = pneg %p282
    $region19: #{loss_func_pallas.2} parent=1 // pred_check_branch
      %285 = sbr.rel (%p283) target = $region21
    $region20: #{loss_func_pallas.2} parent=1 // pred_region
      %286 = vst [vmem:[%s5] sm:$0x7] 0.0
    $region21: #{loss_func_pallas.2} parent=1 // pred_fallthru
      _
    %v287 = vld [vmem:[#allocation22] sm:$0xff]
    %v288 = vld [vmem:[#allocation22 + $0x8] sm:$0xff]
    %v289 = vld [vmem:[#allocation22 + $0x10] sm:$0xff]
    %v290 = vld [vmem:[#allocation22 + $0x18] sm:$0xff]
    %v291 = vld [vmem:[#allocation23] sm:$0xff]
    %v292 = vld [vmem:[#allocation23 + $0x8] sm:$0xff]
    %v293 = vld [vmem:[#allocation23 + $0x10] sm:$0xff]
    %v294 = vld [vmem:[#allocation23 + $0x18] sm:$0xff]
    %v295 = vld [vmem:[#allocation24] sm:$0xff]
    %v296 = vld [vmem:[#allocation24 + $0x8] sm:$0xff]
    %v297 = vld [vmem:[#allocation24 + $0x10] sm:$0xff]
    %v298 = vld [vmem:[#allocation24 + $0x18] sm:$0xff]
    %v299 = vld [vmem:[#allocation25] sm:$0xff]
    %v300 = vld [vmem:[#allocation25 + $0x8] sm:$0xff]
    %v301 = vld [vmem:[#allocation25 + $0x10] sm:$0xff]
    %v302 = vld [vmem:[#allocation25 + $0x18] sm:$0xff]
    %v303 = vlog2.pop %v287
    %v304 = vmul.f32 %v303, 0.6931472
    %v305 = vlog2.pop %v288
    %v306 = vmul.f32 %v305, 0.6931472
    %v307 = vlog2.pop %v289
    %v308 = vmul.f32 %v307, 0.6931472
    %v309 = vlog2.pop %v290
    %v310 = vmul.f32 %v309, 0.6931472
    %v311 = vmax.f32 %v304, -100.0
    %v312 = vmax.f32 %v306, -100.0
    %v313 = vmax.f32 %v308, -100.0
    %v314 = vmax.f32 %v310, -100.0
    %v315 = vsub.f32 1.0, %v287
    %v316 = vsub.f32 1.0, %v288
    %v317 = vsub.f32 1.0, %v289
    %v318 = vsub.f32 1.0, %v290
    %v319 = vlog2.pop %v315
    %v320 = vmul.f32 %v319, 0.6931472
    %v321 = vlog2.pop %v316
    %v322 = vmul.f32 %v321, 0.6931472
    %v323 = vlog2.pop %v317
    %v324 = vmul.f32 %v323, 0.6931472
    %v325 = vlog2.pop %v318
    %v326 = vmul.f32 %v325, 0.6931472
    %v327 = vmax.f32 %v320, -100.0
    %v328 = vmax.f32 %v322, -100.0
    %v329 = vmax.f32 %v324, -100.0
    %v330 = vmax.f32 %v326, -100.0
    %v331 = vsub.f32 %v311, %v327
    %v332 = vsub.f32 %v312, %v328
    %v333 = vsub.f32 %v313, %v329
    %v334 = vsub.f32 %v314, %v330
    %v335 = vmul.f32 %v295, %v331
    %v336 = vmul.f32 %v296, %v332
    %v337 = vmul.f32 %v297, %v333
    %v338 = vmul.f32 %v298, %v334
    %v339 = vadd.f32 %v327, %v335
    %v340 = vadd.f32 %v328, %v336
    %v341 = vadd.f32 %v329, %v337
    %v342 = vadd.f32 %v330, %v338
    %v343 = vsub.f32 0.0, %v339
    %v344 = vsub.f32 0.0, %v340
    %v345 = vsub.f32 0.0, %v341
    %v346 = vsub.f32 0.0, %v342
    %v347 = vsub.f32 %v291, %v299
    %v348 = vsub.f32 %v292, %v300
    %v349 = vsub.f32 %v293, %v301
    %v350 = vsub.f32 %v294, %v302
    %v351 = vmul.f32 %v347, %v347
    %v352 = vmul.f32 %v348, %v348
    %v353 = vmul.f32 %v349, %v349
    %v354 = vmul.f32 %v350, %v350
    %v355 = vmul.f32 %v351, %v295
    %v356 = vmul.f32 %v352, %v296
    %v357 = vmul.f32 %v353, %v297
    %v358 = vmul.f32 %v354, %v298
    %v359 = vld [vmem:[%s5] sm:$0x1]
    %v360 = vadd.f32 %v343, %v344
    %v361 = vadd.f32 %v360, %v345
    %v362 = vadd.f32 %v361, %v346
    %v363 = vrot.slane %v362, 4
    %v364 = vadd.f32 %v362, %v363
    %v365 = vrot.slane %v364, 2
    %v366 = vadd.f32 %v364, %v365
    %v367 = vrot.slane %v366, 1
    %v368 = vadd.f32 %v366, %v367
    %v369 = vadd.f32 %v359, %v368
    %370 = vst [vmem:[%s5] sm:$0x1] %v369
    %v371 = vld [vmem:[%s5 + $0x1] sm:$0x1]
    %v372 = vadd.f32 %v355, %v356
    %v373 = vadd.f32 %v372, %v357
    %v374 = vadd.f32 %v373, %v358
    %v375 = vrot.slane %v374, 4
    %v376 = vadd.f32 %v374, %v375
    %v377 = vrot.slane %v376, 2
    %v378 = vadd.f32 %v376, %v377
    %v379 = vrot.slane %v378, 1
    %v380 = vadd.f32 %v378, %v379
    %v381 = vadd.f32 %v371, %v380
    %382 = vst [vmem:[%s5 + $0x1] sm:$0x1] %v381
    %v383 = vld [vmem:[%s5 + $0x2] sm:$0x1]
    %v384 = vadd.f32 %v295, %v296
    %v385 = vadd.f32 %v384, %v297
    %v386 = vadd.f32 %v385, %v298
    %v387 = vrot.slane %v386, 4
    %v388 = vadd.f32 %v386, %v387
    %v389 = vrot.slane %v388, 2
    %v390 = vadd.f32 %v388, %v389
    %v391 = vrot.slane %v390, 1
    %v392 = vadd.f32 %v390, %v391
    %v393 = vadd.f32 %v383, %v392
    %394 = vst [vmem:[%s5 + $0x2] sm:$0x1] %v393
    // Predicated region
    $region22: #{loss_func_pallas.2} parent=1 // pred_check
      _
    $region23: #{loss_func_pallas.2} parent=1 // pred_check_branch
      %396 = sbr.rel (0) target = $region25
    $region24: #{loss_func_pallas.2} parent=1 // pred_region
      _
    $region25: #{loss_func_pallas.2} parent=1 // pred_fallthru
      _
    // Predicated region
    $region26: #{loss_func_pallas.2} parent=1 // pred_check
      _
    $region27: #{loss_func_pallas.2} parent=1 // pred_check_branch
      %398 = sbr.rel (0) target = $region29
    $region28: #{loss_func_pallas.2} parent=1 // pred_region
      _
    $region29: #{loss_func_pallas.2} parent=1 // pred_fallthru
      _

</llo_original>
